<compile_context>
chip_gen: v7x
topology: tpu7x:2x2x1
jax: 0.10.0
libtpu: 0.0.40
codegen_flags: <defaults>
</compile_context>

<pallas_src>
import functools

import jax
import jax.numpy as jnp
from jax.experimental import pallas as pl
from jax.experimental.pallas import tpu as pltpu


def dqn_kernel(x_ref, w1_ref, w2_ref, b2_ref, w3t_ref, b3_ref, out_ref):
    # x_ref:   (5, TB)  bf16   features + constant-1 row (folded fc1 bias)
    # w1_ref:  (24, 5)  bf16   fc1 weight with bias as last column
    # w2_ref:  (48, 24) bf16
    # b2_ref:  (48, 1)  f32
    # w3t_ref: (48, 2)  f32    fc3 weight, transposed
    # b3_ref:  (2, 1)   f32
    # out_ref: (2, TB)  f32
    # fc1 + ReLU on the MXU (bf16 operands, f32 accumulate): (24,5)@(5,TB)
    h1 = jnp.dot(w1_ref[...], x_ref[...], preferred_element_type=jnp.float32)
    h1 = jnp.maximum(h1, 0.0)
    # fc2 + ReLU on the MXU: (48,24)@(24,TB)
    h2 = jnp.dot(w2_ref[...], h1.astype(jnp.bfloat16),
                 preferred_element_type=jnp.float32)
    h2 = jnp.maximum(h2 + b2_ref[...], 0.0)
    # fc3 (2x48) off the MXU: VPU lane-broadcast multiply + XLU sublane reduce.
    w3t = w3t_ref[...]                                          # (48, 2) f32
    o0 = jnp.sum(w3t[:, 0:1] * h2, axis=0, keepdims=True)       # (1, TB)
    o1 = jnp.sum(w3t[:, 1:2] * h2, axis=0, keepdims=True)       # (1, TB)
    o = jnp.concatenate([o0, o1], axis=0) + b3_ref[...]         # (2, TB)
    out_ref[...] = o.astype(out_ref.dtype)


def _round_up(a, m):
    return (a + m - 1) // m * m


def pack_params(params):
    """Torch-layout params -> kernel-ready params (cast / fold once)."""
    w1, b1, w2, b2, w3, b3 = params
    w1aug = jnp.concatenate([w1, b1], axis=1).astype(jnp.bfloat16)   # (24, 5)
    w2c = w2.astype(jnp.bfloat16)                                    # (48, 24)
    b2c = b2.astype(jnp.float32)                                     # (48, 1)
    w3t = w3.T.astype(jnp.float32)                                   # (48, 2)
    b3c = b3.astype(jnp.float32)                                     # (2, 1)
    return (w1aug, w2c, b2c, w3t, b3c)


def dqn_forward_fm(xt, packed, *, tb_max=16384):
    """Feature-major forward. xt: (4, B) f32. Returns (2, B) f32."""
    w1aug, w2c, b2c, w3t, b3c = packed
    in_dim, B = xt.shape
    out_dim = b3c.shape[0]

    # Batch tile: always a multiple of 128 (lane-divisibility); large batches
    # are split into >= 2 grid steps so the "parallel" axis can span both v7x
    # TensorCores, while small batches stay a single step.
    tb_max = max(128, (tb_max // 128) * 128)
    B128 = _round_up(B, 128)
    half = _round_up(max(1, (B128 + 1) // 2), 128)
    tb = min(tb_max, half if B128 >= 1024 else B128)
    B_pad = _round_up(B128, tb)
    grid = (B_pad // tb,)

    # Append constant-1 row (folds b1 into the fc1 matmul), pad the batch to
    # B_pad and cast to bf16 (halves x DMA bytes).  Under jit this fuses.
    xa = jnp.concatenate([xt, jnp.ones((1, B), xt.dtype)], axis=0)   # (5, B)
    xa = jnp.pad(xa, ((0, 0), (0, B_pad - B))).astype(jnp.bfloat16)
    k_dim = xa.shape[0]

    # Weights/biases: full resident blocks (same block index every step).
    resident = lambda a: pl.BlockSpec(a.shape, lambda i: (0,) * a.ndim)

    weight_bytes = sum(int(a.size) * a.dtype.itemsize
                       for a in (w1aug, w2c, b2c, w3t, b3c))
    cost = pl.CostEstimate(
        flops=2 * B_pad * (k_dim * 24 + 24 * 48 + 48 * out_dim),
        transcendentals=0,
        bytes_accessed=2 * B_pad * k_dim + 4 * B_pad * out_dim + weight_bytes,
    )

    out_t = pl.pallas_call(
        dqn_kernel,
        out_shape=jax.ShapeDtypeStruct((out_dim, B_pad), jnp.float32),
        grid=grid,
        in_specs=[
            pl.BlockSpec((k_dim, tb), lambda i: (0, i)),   # x tile (5, TB)
            resident(w1aug), resident(w2c), resident(b2c),
            resident(w3t), resident(b3c),
        ],
        out_specs=pl.BlockSpec((out_dim, tb), lambda i: (0, i)),
        compiler_params=pltpu.CompilerParams(
            dimension_semantics=("parallel",),   # megacore sharding on v7x
            vmem_limit_bytes=32 << 20,           # safe on v5e/v6e/v7x
        ),
        cost_estimate=cost,
    )(xa, w1aug, w2c, b2c, w3t, b3c)

    return out_t[:, :B]


@functools.partial(jax.jit, static_argnames=("tb_max",))
def dqn_forward(x, packed, tb_max=16384):
    """PyTorch-layout forward. x: (B, 4) f32 -> (B, 2) f32.

    NOTE: prefer keeping activations feature-major in the calling code and
    using dqn_forward_fm directly; the transposes here are XLA copies that
    dominate end-to-end latency at small DQN batch sizes.
    """
    return dqn_forward_fm(x.T, packed, tb_max=tb_max).T


def init_params(key):
    """Deterministic init mimicking nn.Linear uniform(-1/sqrt(fan_in), ...).

    Torch layout: W is (out_features, in_features); bias stored as (out, 1).
    """
    dims = [(4, 24), (24, 48), (48, 2)]
    params = []
    for i, (fan_in, fan_out) in enumerate(dims):
        kw, kb = jax.random.split(jax.random.fold_in(key, i))
        bound = 1.0 / jnp.sqrt(float(fan_in))
        w = jax.random.uniform(kw, (fan_out, fan_in), jnp.float32, -bound, bound)
        b = jax.random.uniform(kb, (fan_out, 1), jnp.float32, -bound, bound)
        params.extend([w, b])
    return tuple(params)


def reference_forward_f32(x, params):
    """Pure-f32 PyTorch-equivalent forward."""
    w1, b1, w2, b2, w3, b3 = params
    h1 = jnp.maximum(x @ w1.T + b1.T, 0.0)
    h2 = jnp.maximum(h1 @ w2.T + b2.T, 0.0)
    return h2 @ w3.T + b3.T


def reference_forward_bf16(x, params):
    """Mirrors the kernel numerics (bf16 MXU operands, f32 accumulation)."""
    w1, b1, w2, b2, w3, b3 = params
    w1a = jnp.concatenate([w1, b1], axis=1).astype(jnp.bfloat16)          # (24,5)
    xa = jnp.concatenate([x, jnp.ones((x.shape[0], 1), x.dtype)], axis=1)
    xa = xa.astype(jnp.bfloat16)                                          # (B,5)
    h1 = jnp.maximum(
        jnp.dot(xa, w1a.T, preferred_element_type=jnp.float32), 0.0)
    h2 = jnp.dot(h1.astype(jnp.bfloat16), w2.astype(jnp.bfloat16).T,
                 preferred_element_type=jnp.float32)
    h2 = jnp.maximum(h2 + b2.T, 0.0)
    return h2 @ w3.T + b3.T                                               # f32


def _check(out, x, params, atol_bf16=1e-4, atol_f32=3e-2):
    ref_mirror = reference_forward_bf16(x, params)
    ref_f32 = reference_forward_f32(x, params)
    assert out.shape == ref_f32.shape, (out.shape, ref_f32.shape)
    assert jnp.allclose(out, ref_mirror, atol=atol_bf16, rtol=atol_bf16), \
        "mismatch vs bf16-mirror reference"
    assert jnp.allclose(out, ref_f32, atol=atol_f32, rtol=atol_f32), \
        "mismatch vs f32 reference (beyond bf16 tolerance)"


if __name__ == "__main__":
    key = jax.random.PRNGKey(0)
    params = init_params(key)
    packed = pack_params(params)

    # Small batch of CartPole-like 4-dim observations (single grid step).
    x = jax.random.normal(jax.random.fold_in(key, 100), (8, 4), jnp.float32)
    out = jax.block_until_ready(dqn_forward(x, packed))
    assert out.shape == (8, 2), out.shape
    _check(out, x, params)

    # Larger batch: exercises padding and the >=2-step "parallel" grid split.
    x_big = jax.random.normal(jax.random.fold_in(key, 200), (1000, 4), jnp.float32)
    out_big = jax.block_until_ready(dqn_forward(x_big, packed))
    assert out_big.shape == (1000, 2), out_big.shape
    _check(out_big, x_big, params)

    # Non-multiple-of-128 tb_max: verifies tb is clamped to a 128 multiple.
    x_odd = jax.random.normal(jax.random.fold_in(key, 300), (2000, 4), jnp.float32)
    out_odd = jax.block_until_ready(dqn_forward(x_odd, packed, tb_max=1000))
    assert out_odd.shape == (2000, 2), out_odd.shape
    _check(out_odd, x_odd, params)

    print("KERNEL_OK")
</pallas_src>

<mosaic_0001>
module attributes {stable_mosaic.version = 11 : i64} {
  func.func @dqn_kernel(%arg0: i32, %arg1: memref<5x128xbf16, #tpu.memory_space<vmem>>, %arg2: memref<24x5xbf16, #tpu.memory_space<vmem>>, %arg3: memref<48x24xbf16, #tpu.memory_space<vmem>>, %arg4: memref<48x1xf32, #tpu.memory_space<vmem>>, %arg5: memref<48x2xf32, #tpu.memory_space<vmem>>, %arg6: memref<2x1xf32, #tpu.memory_space<vmem>>, %arg7: memref<2x128xf32, #tpu.memory_space<vmem>>) attributes {dimension_semantics = [#tpu.dimension_semantics<parallel>], iteration_bounds = array<i64: 1>, scalar_prefetch = 0 : i64, scratch_operands = 0 : i64, tpu.core_type = #tpu.core_type<tc>, window_params = [{transform_indices = @transform_0, window_bounds = array<i64: 5, 128>}, {pipeline_mode = #tpu.pipeline_mode<synchronous>, transform_indices = @transform_1, window_bounds = array<i64: 24, 5>}, {pipeline_mode = #tpu.pipeline_mode<synchronous>, transform_indices = @transform_2, window_bounds = array<i64: 48, 24>}, {pipeline_mode = #tpu.pipeline_mode<synchronous>, transform_indices = @transform_3, window_bounds = array<i64: 48, 1>}, {pipeline_mode = #tpu.pipeline_mode<synchronous>, transform_indices = @transform_4, window_bounds = array<i64: 48, 2>}, {pipeline_mode = #tpu.pipeline_mode<synchronous>, transform_indices = @transform_5, window_bounds = array<i64: 2, 1>}, {transform_indices = @transform_6, window_bounds = array<i64: 2, 128>}]} {
    %c0 = arith.constant 0 : index
    %c0_0 = arith.constant 0 : index
    %0 = vector.load %arg2[%c0, %c0_0] : memref<24x5xbf16, #tpu.memory_space<vmem>>, vector<24x5xbf16>
    %c0_1 = arith.constant 0 : index
    %c0_2 = arith.constant 0 : index
    %1 = vector.load %arg1[%c0_1, %c0_2] : memref<5x128xbf16, #tpu.memory_space<vmem>>, vector<5x128xbf16>
    %cst = arith.constant dense<0.000000e+00> : vector<24x128xf32>
    %2 = tpu.matmul %0, %1, %cst {dimension_numbers = #tpu.dot_dimension_numbers<[1], [0], [0], [1], [0, 0, 1, 1], [], []>} : vector<24x5xbf16>, vector<5x128xbf16>, vector<24x128xf32> -> vector<24x128xf32>
    %cst_3 = arith.constant 0.000000e+00 : f32
    %3 = vector.broadcast %cst_3 : f32 to vector<24x128xf32>
    %4 = arith.maximumf %2, %3 : vector<24x128xf32>
    %c0_4 = arith.constant 0 : index
    %c0_5 = arith.constant 0 : index
    %5 = vector.load %arg3[%c0_4, %c0_5] : memref<48x24xbf16, #tpu.memory_space<vmem>>, vector<48x24xbf16>
    %6 = arith.truncf %4 : vector<24x128xf32> to vector<24x128xbf16>
    %cst_6 = arith.constant dense<0.000000e+00> : vector<48x128xf32>
    %7 = tpu.matmul %5, %6, %cst_6 {dimension_numbers = #tpu.dot_dimension_numbers<[1], [0], [0], [1], [0, 0, 1, 1], [], []>} : vector<48x24xbf16>, vector<24x128xbf16>, vector<48x128xf32> -> vector<48x128xf32>
    %c0_7 = arith.constant 0 : index
    %c0_8 = arith.constant 0 : index
    %8 = vector.load %arg4[%c0_7, %c0_8] : memref<48x1xf32, #tpu.memory_space<vmem>>, vector<48x1xf32>
    %9 = vector.broadcast %8 : vector<48x1xf32> to vector<48x128xf32>
    %10 = arith.addf %7, %9 : vector<48x128xf32>
    %cst_9 = arith.constant 0.000000e+00 : f32
    %11 = vector.broadcast %cst_9 : f32 to vector<48x128xf32>
    %12 = arith.maximumf %10, %11 : vector<48x128xf32>
    %c0_10 = arith.constant 0 : index
    %c0_11 = arith.constant 0 : index
    %13 = vector.load %arg5[%c0_10, %c0_11] : memref<48x2xf32, #tpu.memory_space<vmem>>, vector<48x2xf32>
    %14 = vector.extract_strided_slice %13 {offsets = [0, 0], sizes = [48, 1], strides = [1, 1]} : vector<48x2xf32> to vector<48x1xf32>
    %15 = vector.broadcast %14 : vector<48x1xf32> to vector<48x128xf32>
    %16 = arith.mulf %15, %12 : vector<48x128xf32>
    %cst_12 = arith.constant dense<0.000000e+00> : vector<128xf32>
    %17 = vector.multi_reduction <add>, %16, %cst_12 [0] : vector<48x128xf32> to vector<128xf32>
    %18 = vector.shape_cast %17 : vector<128xf32> to vector<1x128xf32>
    %19 = vector.extract_strided_slice %13 {offsets = [0, 1], sizes = [48, 1], strides = [1, 1]} : vector<48x2xf32> to vector<48x1xf32>
    %20 = vector.broadcast %19 : vector<48x1xf32> to vector<48x128xf32>
    %21 = arith.mulf %20, %12 : vector<48x128xf32>
    %cst_13 = arith.constant dense<0.000000e+00> : vector<128xf32>
    %22 = vector.multi_reduction <add>, %21, %cst_13 [0] : vector<48x128xf32> to vector<128xf32>
    %23 = vector.shape_cast %22 : vector<128xf32> to vector<1x128xf32>
    %24 = tpu.concatenate %18, %23 in 0 : vector<1x128xf32>, vector<1x128xf32> -> vector<2x128xf32>
    %c0_14 = arith.constant 0 : index
    %c0_15 = arith.constant 0 : index
    %25 = vector.load %arg6[%c0_14, %c0_15] : memref<2x1xf32, #tpu.memory_space<vmem>>, vector<2x1xf32>
    %26 = vector.broadcast %25 : vector<2x1xf32> to vector<2x128xf32>
    %27 = arith.addf %24, %26 : vector<2x128xf32>
    %c0_16 = arith.constant 0 : index
    %c0_17 = arith.constant 0 : index
    %28 = vector.load %arg7[%c0_16, %c0_17] : memref<2x128xf32, #tpu.memory_space<vmem>>, vector<2x128xf32>
    tpu.vector_store %arg7[%c0_16, %c0_17], %27 {strides = array<i32>} : memref<2x128xf32, #tpu.memory_space<vmem>>, vector<2x128xf32>,
    return
  }
  func.func @transform_0(%arg0: i32) -> (i32, i32) {
    %c0_i32 = arith.constant 0 : i32
    %c0_i32_0 = arith.constant 0 : i32
    return %c0_i32, %arg0 : i32, i32
  }
  func.func @transform_1(%arg0: i32) -> (i32, i32) {
    %c0_i32 = arith.constant 0 : i32
    %c0_i32_0 = arith.constant 0 : i32
    %c0_i32_1 = arith.constant 0 : i32
    return %c0_i32, %c0_i32_0 : i32, i32
  }
  func.func @transform_2(%arg0: i32) -> (i32, i32) {
    %c0_i32 = arith.constant 0 : i32
    %c0_i32_0 = arith.constant 0 : i32
    %c0_i32_1 = arith.constant 0 : i32
    return %c0_i32, %c0_i32_0 : i32, i32
  }
  func.func @transform_3(%arg0: i32) -> (i32, i32) {
    %c0_i32 = arith.constant 0 : i32
    %c0_i32_0 = arith.constant 0 : i32
    %c0_i32_1 = arith.constant 0 : i32
    return %c0_i32, %c0_i32_0 : i32, i32
  }
  func.func @transform_4(%arg0: i32) -> (i32, i32) {
    %c0_i32 = arith.constant 0 : i32
    %c0_i32_0 = arith.constant 0 : i32
    %c0_i32_1 = arith.constant 0 : i32
    return %c0_i32, %c0_i32_0 : i32, i32
  }
  func.func @transform_5(%arg0: i32) -> (i32, i32) {
    %c0_i32 = arith.constant 0 : i32
    %c0_i32_0 = arith.constant 0 : i32
    %c0_i32_1 = arith.constant 0 : i32
    return %c0_i32, %c0_i32_0 : i32, i32
  }
  func.func @transform_6(%arg0: i32) -> (i32, i32) {
    %c0_i32 = arith.constant 0 : i32
    %c0_i32_0 = arith.constant 0 : i32
    return %c0_i32, %arg0 : i32, i32
  }
}

</mosaic_0001>

<llo_original>
// kernel: dqn_forward.1
$region0: #{dqn_forward.1}
  #allocation0 [shape = 'u32[]', space=smem, size = 0x4, offset = 0x4, fixed_abs, tag = 'smem constant byte address 0x4 - core index']
  #allocation1 [shape = 'u32[144,128]{1,0:T(1,128)}', space=vmem, size = 0x12000, scoped, tag = 'internal scratch']
  %s0 = inlined_call_operand.vmem [shape: bf16[5,128], index: 0, kind: input, shape index: {}]
  %s1 = inlined_call_operand.vmem [shape: bf16[24,5], index: 1, kind: input, shape index: {}]
  %s2 = inlined_call_operand.vmem [shape: bf16[48,24], index: 2, kind: input, shape index: {}]
  %s3 = inlined_call_operand.vmem [shape: f32[48,1], index: 3, kind: input, shape index: {}]
  %s4 = inlined_call_operand.vmem [shape: f32[48,2], index: 4, kind: input, shape index: {}]
  %s5 = inlined_call_operand.vmem [shape: f32[2,1], index: 5, kind: input, shape index: {}]
  %s6 = inlined_call_operand.vmem [shape: f32[2,128], index: 6, kind: output, shape index: {}]
  %s7 = sld [smem:[#allocation0]]
  $region34: #{dqn_forward.1} parent=0
    _
  %s9 = ssub.s32 1, %s7
  %s10 = scalar_select 0, %s9, %s7
  // Predicated region
  $region2: #{dqn_forward.1} parent=0 // pred_check
    _
  $region3: #{dqn_forward.1} parent=0 // pred_check_branch
    %12 = sbr.rel (0) target = $region5
  $region4: #{dqn_forward.1} parent=0 // pred_region
    _
  $region5: #{dqn_forward.1} parent=0 // pred_fallthru
    _
  // Predicated region
  $region6: #{dqn_forward.1} parent=0 // pred_check
    _
  $region7: #{dqn_forward.1} parent=0 // pred_check_branch
    %14 = sbr.rel (0) target = $region9
  $region8: #{dqn_forward.1} parent=0 // pred_region
    _
  $region9: #{dqn_forward.1} parent=0 // pred_fallthru
    _
  // Predicated region
  $region10: #{dqn_forward.1} parent=0 // pred_check
    _
  $region11: #{dqn_forward.1} parent=0 // pred_check_branch
    %16 = sbr.rel (0) target = $region13
  $region12: #{dqn_forward.1} parent=0 // pred_region
    _
  $region13: #{dqn_forward.1} parent=0 // pred_fallthru
    _
  // Predicated region
  $region14: #{dqn_forward.1} parent=0 // pred_check
    _
  $region15: #{dqn_forward.1} parent=0 // pred_check_branch
    %18 = sbr.rel (0) target = $region17
  $region16: #{dqn_forward.1} parent=0 // pred_region
    _
  $region17: #{dqn_forward.1} parent=0 // pred_fallthru
    _
  // Predicated region
  $region18: #{dqn_forward.1} parent=0 // pred_check
    _
  $region19: #{dqn_forward.1} parent=0 // pred_check_branch
    %20 = sbr.rel (0) target = $region21
  $region20: #{dqn_forward.1} parent=0 // pred_region
    _
  $region21: #{dqn_forward.1} parent=0 // pred_fallthru
    _
  // Predicated region
  $region22: #{dqn_forward.1} parent=0 // pred_check
    _
  $region23: #{dqn_forward.1} parent=0 // pred_check_branch
    %22 = sbr.rel (0) target = $region25
  $region24: #{dqn_forward.1} parent=0 // pred_region
    _
  $region25: #{dqn_forward.1} parent=0 // pred_fallthru
    _
  %v24 = vld [vmem:[%s1] sm:$0xf]
  %v25 = vld [vmem:[%s1 + $0x4] sm:$0xf]
  %v26 = vld [vmem:[%s1 + $0x8] sm:$0xf]
  %v27 = vld [vmem:[%s0] sm:$0x7]
  %v31 = vunpack.c.l.b16 %v24
  %v32 = vunpack.c.l.b16 %v25
  %v33 = vunpack.c.l.b16 %v26
  %v34 = vpack.c.b16 %v32, %v31
  %v35 = vpack.c.b16 %v33, %v33
  %vm36 = vcmask 39936
  %v38 = vsel %vm36, %v34, 0
  %v41 = vsel %vm36, %v35, 0
  %vm43 = vcmask 1041408
  %vm44 = vcmask 1042432
  %v45 = vsel %vm43, 4294967295, 65535
  %v46 = vsel %vm44, %v45, 0
  %v48 = vand.u32 %v27, %v46
  %50 = vmatprep.subr.bf16.mxu0 0
  %51 = vmatpush1.bf16.msra.mxu0 %v48
  %52 = vmatprep.subr.bf16.mxu0 0
  %53 = vmatpush1.bf16.msra.mxu0 0
  %54 = vmatprep.subr.bf16.mxu0 0
  %55 = vmatpush1.bf16.msra.mxu0 0
  %56 = vmatprep.subr.bf16.mxu0 0
  %57 = vmatpush1.bf16.msra.mxu0 0
  %58 = vmatprep.subr.bf16.mxu0 0
  %59 = vmatpush1.bf16.msra.mxu0 0
  %60 = vmatprep.subr.bf16.mxu0 0
  %61 = vmatpush1.bf16.msra.mxu0 0
  %62 = vmatprep.subr.bf16.mxu0 0
  %63 = vmatpush1.bf16.msra.mxu0 0
  %64 = vmatprep.subr.bf16.mxu0 0
  %65 = vmatpush1.bf16.msra.mxu0 0
  %66 = vmatprep.subr.bf16.mxu0 0
  %67 = vmatpush1.bf16.msra.mxu0 0
  %68 = vmatprep.subr.bf16.mxu0 0
  %69 = vmatpush1.bf16.msra.mxu0 0
  %70 = vmatprep.subr.bf16.mxu0 0
  %71 = vmatpush1.bf16.msra.mxu0 0
  %72 = vmatprep.subr.bf16.mxu0 0
  %73 = vmatpush1.bf16.msra.mxu0 0
  %74 = vmatprep.subr.bf16.mxu0 0
  %75 = vmatpush1.bf16.msra.mxu0 0
  %76 = vmatprep.subr.bf16.mxu0 0
  %77 = vmatpush1.bf16.msra.mxu0 0
  %78 = vmatprep.subr.bf16.mxu0 0
  %79 = vmatpush1.bf16.msra.mxu0 0
  %80 = vmatprep.subr.bf16.mxu0 0
  %81 = vmatpush1.bf16.msra.mxu0 0
  %82 = vmatprep.mubr.bf16.mxu0 0
  %83 = vmatmul.mubr.bf16.gmra.mrb[0].mxu0 %v38
  %v84 = vpop.f32.mrb[0].mxu0
  %v85 = vadd.f32 0.0, %v84
  %v86 = vpop.f32.mrb[0].mxu0
  %v87 = vpop.f32.mrb[0].mxu0
  %v88 = vadd.f32 0.0, %v87
  %v89 = vpop.f32.mrb[0].mxu0
  %90 = vmatprep.mubr.bf16.mxu0 0
  %91 = vmatmul.mubr.bf16.gmra.mrb[0].mxu0 %v41
  %v92 = vpop.f32.mrb[0].mxu0
  %v93 = vadd.f32 0.0, %v92
  %v94 = vpop.f32.mrb[0].mxu0
  %v95 = vpop.f32.mrb[0].mxu0
  %v96 = vpop.f32.mrb[0].mxu0
  %97 = vdwg.mxu0
  %v98 = vmax.f32 %v85, 0.0
  %v99 = vmax.f32 %v88, 0.0
  %v100 = vmax.f32 %v93, 0.0
  %v101 = vld [vmem:[%s2] sm:$0xf]
  %v102 = vld [vmem:[%s2 + $0x4] sm:$0xf]
  %v103 = vld [vmem:[%s2 + $0x8] sm:$0xf]
  %v104 = vld [vmem:[%s2 + $0xc] sm:$0xf]
  %v105 = vld [vmem:[%s2 + $0x10] sm:$0xf]
  %v106 = vld [vmem:[%s2 + $0x14] sm:$0xf]
  %v107 = vpack.c.bf16 %v99, %v98
  %v108 = vpack.c.bf16 %v100, %v100
  %v109 = vld [vmem:[%s3] sm:$0xff]
  %v110 = vld [vmem:[%s3 + $0x8] sm:$0xff]
  %v111 = vld [vmem:[%s3 + $0x10] sm:$0xff]
  %v112 = vld [vmem:[%s3 + $0x18] sm:$0xff]
  %v113 = vld [vmem:[%s3 + $0x20] sm:$0xff]
  %v114 = vld [vmem:[%s3 + $0x28] sm:$0xff]
  %116 = vset.pattern.permute.xlu0 0
  %117 = vperm.xlu0 %116, %v109
  %v118 = vpop.permute.xlu0 %117
  %121 = vset.pattern.permute.xlu0 0
  %122 = vperm.xlu0 %121, %v110
  %v123 = vpop.permute.xlu0 %122
  %126 = vset.pattern.permute.xlu0 0
  %127 = vperm.xlu0 %126, %v111
  %v128 = vpop.permute.xlu0 %127
  %131 = vset.pattern.permute.xlu0 0
  %132 = vperm.xlu0 %131, %v112
  %v133 = vpop.permute.xlu0 %132
  %136 = vset.pattern.permute.xlu0 0
  %137 = vperm.xlu0 %136, %v113
  %v138 = vpop.permute.xlu0 %137
  %141 = vset.pattern.permute.xlu0 0
  %142 = vperm.xlu0 %141, %v114
  %v143 = vpop.permute.xlu0 %142
  %v151 = vunpack.c.l.b16 %v101
  %v152 = vunpack.c.l.b16 %v102
  %v153 = vunpack.c.l.b16 %v103
  %v154 = vunpack.c.l.b16 %v104
  %v155 = vunpack.c.l.b16 %v105
  %v156 = vunpack.c.l.b16 %v106
  %v157 = vpack.c.b16 %v152, %v151
  %v158 = vpack.c.b16 %v154, %v153
  %v159 = vpack.c.b16 %v156, %v155
  %vm160 = vcmask 195584
  %v162 = vsel %vm160, %v157, 0
  %v165 = vsel %vm160, %v158, 0
  %v168 = vsel %vm160, %v159, 0
  %vm170 = vcmask 1043456
  %v172 = vsel %vm170, %v108, 0
  %174 = vmatprep.subr.bf16.mxu0 0
  %175 = vmatpush1.bf16.msra.mxu0 %v107
  %176 = vmatprep.subr.bf16.mxu0 0
  %177 = vmatpush1.bf16.msra.mxu0 %v172
  %178 = vmatprep.subr.bf16.mxu0 0
  %179 = vmatpush1.bf16.msra.mxu0 0
  %180 = vmatprep.subr.bf16.mxu0 0
  %181 = vmatpush1.bf16.msra.mxu0 0
  %182 = vmatprep.subr.bf16.mxu0 0
  %183 = vmatpush1.bf16.msra.mxu0 0
  %184 = vmatprep.subr.bf16.mxu0 0
  %185 = vmatpush1.bf16.msra.mxu0 0
  %186 = vmatprep.subr.bf16.mxu0 0
  %187 = vmatpush1.bf16.msra.mxu0 0
  %188 = vmatprep.subr.bf16.mxu0 0
  %189 = vmatpush1.bf16.msra.mxu0 0
  %190 = vmatprep.subr.bf16.mxu0 0
  %191 = vmatpush1.bf16.msra.mxu0 0
  %192 = vmatprep.subr.bf16.mxu0 0
  %193 = vmatpush1.bf16.msra.mxu0 0
  %194 = vmatprep.subr.bf16.mxu0 0
  %195 = vmatpush1.bf16.msra.mxu0 0
  %196 = vmatprep.subr.bf16.mxu0 0
  %197 = vmatpush1.bf16.msra.mxu0 0
  %198 = vmatprep.subr.bf16.mxu0 0
  %199 = vmatpush1.bf16.msra.mxu0 0
  %200 = vmatprep.subr.bf16.mxu0 0
  %201 = vmatpush1.bf16.msra.mxu0 0
  %202 = vmatprep.subr.bf16.mxu0 0
  %203 = vmatpush1.bf16.msra.mxu0 0
  %204 = vmatprep.subr.bf16.mxu0 0
  %205 = vmatpush1.bf16.msra.mxu0 0
  %206 = vmatprep.mubr.bf16.mxu0 0
  %207 = vmatmul.mubr.bf16.gmra.mrb[0].mxu0 %v162
  %v208 = vpop.f32.mrb[0].mxu0
  %v209 = vadd.f32 %v118, %v208
  %v210 = vpop.f32.mrb[0].mxu0
  %v211 = vpop.f32.mrb[0].mxu0
  %v212 = vadd.f32 %v123, %v211
  %v213 = vpop.f32.mrb[0].mxu0
  %214 = vmatprep.mubr.bf16.mxu0 0
  %215 = vmatmul.mubr.bf16.gmra.mrb[0].mxu0 %v165
  %v216 = vpop.f32.mrb[0].mxu0
  %v217 = vadd.f32 %v128, %v216
  %v218 = vpop.f32.mrb[0].mxu0
  %v219 = vpop.f32.mrb[0].mxu0
  %v220 = vadd.f32 %v133, %v219
  %v221 = vpop.f32.mrb[0].mxu0
  %222 = vmatprep.mubr.bf16.mxu0 0
  %223 = vmatmul.mubr.bf16.gmra.mrb[0].mxu0 %v168
  %v224 = vpop.f32.mrb[0].mxu0
  %v225 = vadd.f32 %v138, %v224
  %v226 = vpop.f32.mrb[0].mxu0
  %v227 = vpop.f32.mrb[0].mxu0
  %v228 = vadd.f32 %v143, %v227
  %v229 = vpop.f32.mrb[0].mxu0
  %230 = vdwg.mxu0
  %v231 = vmax.f32 %v209, 0.0
  %v232 = vmax.f32 %v212, 0.0
  %v233 = vmax.f32 %v217, 0.0
  %v234 = vmax.f32 %v220, 0.0
  %v235 = vmax.f32 %v225, 0.0
  %v236 = vmax.f32 %v228, 0.0
  %v237 = vld [vmem:[%s4] sm:$0xff]
  %v238 = vld [vmem:[%s4 + $0x8] sm:$0xff]
  %v239 = vld [vmem:[%s4 + $0x10] sm:$0xff]
  %v240 = vld [vmem:[%s4 + $0x18] sm:$0xff]
  %v241 = vld [vmem:[%s4 + $0x20] sm:$0xff]
  %v242 = vld [vmem:[%s4 + $0x28] sm:$0xff]
  %244 = vset.pattern.permute.xlu0 0
  %245 = vperm.xlu0 %244, %v237
  %v246 = vpop.permute.xlu0 %245
  %249 = vset.pattern.permute.xlu0 0
  %250 = vperm.xlu0 %249, %v238
  %v251 = vpop.permute.xlu0 %250
  %254 = vset.pattern.permute.xlu0 0
  %255 = vperm.xlu0 %254, %v239
  %v256 = vpop.permute.xlu0 %255
  %259 = vset.pattern.permute.xlu0 0
  %260 = vperm.xlu0 %259, %v240
  %v261 = vpop.permute.xlu0 %260
  %264 = vset.pattern.permute.xlu0 0
  %265 = vperm.xlu0 %264, %v241
  %v266 = vpop.permute.xlu0 %265
  %269 = vset.pattern.permute.xlu0 0
  %270 = vperm.xlu0 %269, %v242
  %v271 = vpop.permute.xlu0 %270
  %v273 = vmul.f32 %v246, %v231
  %v274 = vmul.f32 %v251, %v232
  %v275 = vmul.f32 %v256, %v233
  %v276 = vmul.f32 %v261, %v234
  %v277 = vmul.f32 %v266, %v235
  %v278 = vmul.f32 %v271, %v236
  %v279 = vadd.f32 %v273, %v274
  %v280 = vadd.f32 %v279, %v275
  %v281 = vadd.f32 %v280, %v276
  %v282 = vadd.f32 %v281, %v277
  %v283 = vadd.f32 %v282, %v278
  %v284 = vrot.slane %v283, 4
  %v285 = vadd.f32 %v283, %v284
  %v286 = vrot.slane %v285, 2
  %v287 = vadd.f32 %v285, %v286
  %v288 = vrot.slane %v287, 1
  %v289 = vadd.f32 %v287, %v288
  %290 = vset.pattern.permute.xlu0 1
  %291 = vperm.xlu0 %290, %v237
  %v292 = vpop.permute.xlu0 %291
  %294 = vset.pattern.permute.xlu0 1
  %295 = vperm.xlu0 %294, %v238
  %v296 = vpop.permute.xlu0 %295
  %298 = vset.pattern.permute.xlu0 1
  %299 = vperm.xlu0 %298, %v239
  %v300 = vpop.permute.xlu0 %299
  %302 = vset.pattern.permute.xlu0 1
  %303 = vperm.xlu0 %302, %v240
  %v304 = vpop.permute.xlu0 %303
  %306 = vset.pattern.permute.xlu0 1
  %307 = vperm.xlu0 %306, %v241
  %v308 = vpop.permute.xlu0 %307
  %310 = vset.pattern.permute.xlu0 1
  %311 = vperm.xlu0 %310, %v242
  %v312 = vpop.permute.xlu0 %311
  %v314 = vmul.f32 %v292, %v231
  %v315 = vmul.f32 %v296, %v232
  %v316 = vmul.f32 %v300, %v233
  %v317 = vmul.f32 %v304, %v234
  %v318 = vmul.f32 %v308, %v235
  %v319 = vmul.f32 %v312, %v236
  %v320 = vadd.f32 %v314, %v315
  %v321 = vadd.f32 %v320, %v316
  %v322 = vadd.f32 %v321, %v317
  %v323 = vadd.f32 %v322, %v318
  %v324 = vadd.f32 %v323, %v319
  %v325 = vrot.slane %v324, 4
  %v326 = vadd.f32 %v324, %v325
  %v327 = vrot.slane %v326, 2
  %v328 = vadd.f32 %v326, %v327
  %v329 = vrot.slane %v328, 1
  %v330 = vadd.f32 %v328, %v329
  %vm331 = vcmask 1040384
  %v332 = vsel %vm331, %v289, %v330
  %v333 = vld [vmem:[%s5] sm:$0x3]
  %335 = vset.pattern.permute.xlu0 0
  %336 = vperm.xlu0 %335, %v333
  %v337 = vpop.permute.xlu0 %336
  %v339 = vadd.f32 %v332, %v337
  %340 = vst [vmem:[%s6] sm:$0x3] %v339
  // Predicated region
  $region26: #{dqn_forward.1} parent=0 // pred_check
    _
  $region27: #{dqn_forward.1} parent=0 // pred_check_branch
    %342 = sbr.rel (0) target = $region29
  $region28: #{dqn_forward.1} parent=0 // pred_region
    _
  $region29: #{dqn_forward.1} parent=0 // pred_fallthru
    _
  // Predicated region
  $region30: #{dqn_forward.1} parent=0 // pred_check
    _
  $region31: #{dqn_forward.1} parent=0 // pred_check_branch
    %344 = sbr.rel (0) target = $region33
  $region32: #{dqn_forward.1} parent=0 // pred_region
    _
  $region33: #{dqn_forward.1} parent=0 // pred_fallthru
    _

</llo_original>
